<compile_context>
chip_gen: v6e
topology: v6e:2x2x1
jax: 0.10.0
libtpu: 0.0.40
codegen_flags: <defaults>
</compile_context>

<pallas_src>
import functools

import numpy as np

import jax
import jax.numpy as jnp
from jax.experimental import pallas as pl
from jax.experimental.pallas import tpu as pltpu


_TAPS = tuple((dy - 1, dx - 1) for dy in range(3) for dx in range(3))  # (oy, ox), t = dy*3+dx


def _round_up(v, m):
    return (v + m - 1) // m * m


def _fused_kernel(mask_ref, g_ref, w1_ref, b1_ref, w2_ref, b2_ref, out_ref,
                  *, W, gc8, nc2):
    """One grid step: guide (gc8, L) -> fused gamma|beta (nc2, L).

    L = images_per_step * H * W (flattened lane axis).  3x3 SAME convs are done as static
    lane rotations + precomputed 0/1 boundary masks; the 9 taps are folded into the
    contraction (conv1) / stacked along M (conv2) so each conv is a single MXU pass.
    """
    g = g_ref[0]                 # (gc8, L) f32
    mask = mask_ref[...]         # (9, sub, L) f32, values are exactly 0.0 / 1.0
    L = g.shape[-1]

    def shifted(v, t):
        # out[:, j] = v[:, j + oy*W + ox]; wrapped lanes are zeroed by mask[t].
        oy, ox = _TAPS[t]
        s = oy * W + ox
        if s == 0:
            return v
        return pltpu.roll(v, shift=(-s) % L, axis=1)

    # ---- shared conv + ReLU: 9 taps folded into K (im2col), single MXU pass ----------
    pieces = []
    for t in range(9):
        p = shifted(g, t)
        if t != 4:                                   # center-tap mask is all ones
            p = p * mask[t, :gc8, :]
        pieces.append(p)
    patches = jnp.concatenate(pieces, axis=0).astype(jnp.bfloat16)        # (9*gc8, L)
    acc1 = jnp.dot(w1_ref[...], patches, preferred_element_type=jnp.float32)
    actv = jnp.maximum(acc1 + b1_ref[...], 0.0).astype(jnp.bfloat16)      # (nh, L)

    # ---- gamma & beta convs: Cout fused, 9 taps stacked on M, one MXU pass -----------
    full = jnp.dot(w2_ref[...], actv, preferred_element_type=jnp.float32)  # (9*nc2, L)
    acc = None
    for t in range(9):
        piece = shifted(full[t * nc2:(t + 1) * nc2, :], t)
        if t != 4:
            piece = piece * mask[t, :nc2, :]          # bf16/f32-safe: mask is 0/1 exact
        acc = piece if acc is None else acc + piece
    out_ref[0] = (acc + b2_ref[...]).astype(out_ref.dtype)                # (nc2, L)


def _boundary_masks(H, W):
    """(9, H*W) float32 validity masks for each 3x3 tap (SAME / zero padding)."""
    yy, xx = np.meshgrid(np.arange(H), np.arange(W), indexing="ij")
    yy = yy.reshape(-1)
    xx = xx.reshape(-1)
    m = np.empty((9, H * W), np.float32)
    for t, (oy, ox) in enumerate(_TAPS):
        valid = (yy + oy >= 0) & (yy + oy < H) & (xx + ox >= 0) & (xx + ox < W)
        m[t] = valid.astype(np.float32)
    return m


def _vmem_limit_bytes():
    # Generation aware: ~56 MiB on v7x (64 MiB physical), up to 112 MiB on v5e/v6e.
    try:
        phys_mib = pltpu.get_tpu_info().vmem_capacity_bytes // (1024 * 1024)
        return int(max(32, min(phys_mib - 8, 112))) * 1024 * 1024
    except Exception:
        return 32 * 1024 * 1024


def guide_correlation(x, guide, params, *, lane_budget=8192):
    """x, guide: NCHW float32. Returns (gamma, beta) in NCHW, matching the PyTorch module."""
    N, _, H, W = x.shape
    if guide.shape[2:] != (H, W):
        # nearest-neighbor resize of guide to x's spatial size (glue, not hot path).
        # Note: jax.image.resize 'nearest' may differ from F.interpolate at tie-break pixels.
        guide = jax.image.resize(
            guide, (guide.shape[0], guide.shape[1], H, W), method="nearest")

    gc = guide.shape[1]
    nh = params["w_shared"].shape[-1]
    nc = params["w_gamma"].shape[-1]
    HW = H * W

    gc8 = _round_up(gc, 8)        # sublane-aligned guide channels
    nc2 = _round_up(2 * nc, 8)    # fused (gamma|beta) output channels, sublane-aligned
    sub = max(gc8, nc2)

    # Fold several whole images onto the lane axis per grid step (single-TC chips see one
    # long lane-dense stream instead of a serial per-image grid).
    ips = 1
    for d in range(1, N + 1):
        if N % d == 0 and d * HW <= lane_budget:
            ips = d
    G = N // ips
    L = ips * HW
    # TODO(synk): for very large H*W (one image no longer fits VMEM, esp. v7x's 64 MiB)
    # add a spatial row-block grid axis with a 1-row halo instead of whole images.

    f32, bf16 = jnp.float32, jnp.bfloat16

    # ---- pack weights (tiny XLA ops; constant-folded / hoisted under jit) -------------
    w_sh = jnp.pad(params["w_shared"].astype(f32), ((0, 0), (0, 0), (0, gc8 - gc), (0, 0)))
    w1 = w_sh.reshape(9 * gc8, nh).T.astype(bf16)                              # (nh, 9*gc8)
    b1 = params["b_shared"].reshape(nh, 1).astype(f32)

    w_gb = jnp.concatenate([params["w_gamma"], params["w_beta"]], axis=-1)     # (3,3,nh,2nc)
    w_gb = jnp.pad(w_gb.astype(f32), ((0, 0), (0, 0), (0, 0), (0, nc2 - 2 * nc)))
    w2 = jnp.transpose(w_gb, (0, 1, 3, 2)).reshape(9 * nc2, nh).astype(bf16)   # (9*nc2, nh)
    b2 = jnp.pad(jnp.concatenate([params["b_gamma"], params["b_beta"]]).astype(f32),
                 (0, nc2 - 2 * nc)).reshape(nc2, 1)

    # ---- precompute per-tap boundary masks, pre-broadcast over sublanes ---------------
    mask = np.broadcast_to(_boundary_masks(H, W)[:, None, :], (9, sub, HW))
    mask = jnp.asarray(np.tile(mask, (1, 1, ips)), dtype=f32)                  # (9, sub, L)

    # ---- pack guide: NCHW -> (grid, gc8, ips*HW) channel-major, lane-flattened --------
    g = jnp.pad(guide.astype(f32).reshape(N, gc, HW), ((0, 0), (0, gc8 - gc), (0, 0)))
    g = g.reshape(G, ips, gc8, HW).transpose(0, 2, 1, 3).reshape(G, gc8, L)

    kernel = functools.partial(_fused_kernel, W=W, gc8=gc8, nc2=nc2)

    out = pl.pallas_call(
        kernel,
        out_shape=jax.ShapeDtypeStruct((G, nc2, L), f32),
        grid=(G,),
        in_specs=[
            pl.BlockSpec((9, sub, L), lambda n: (0, 0, 0)),            # masks (constant)
            pl.BlockSpec((1, gc8, L), lambda n: (n, 0, 0)),            # guide
            pl.BlockSpec((nh, 9 * gc8), lambda n: (0, 0)),             # w1
            pl.BlockSpec((nh, 1), lambda n: (0, 0)),                   # b1
            pl.BlockSpec((9 * nc2, nh), lambda n: (0, 0)),             # w2
            pl.BlockSpec((nc2, 1), lambda n: (0, 0)),                  # b2
        ],
        out_specs=pl.BlockSpec((1, nc2, L), lambda n: (n, 0, 0)),
        compiler_params=pltpu.CompilerParams(
            dimension_semantics=("parallel",),
            vmem_limit_bytes=_vmem_limit_bytes()),
    )(mask, g, w1, b1, w2, b2)

    # ---- unpack fused (nc2, L) -> gamma/beta NCHW --------------------------------------
    out = out.reshape(G, nc2, ips, HW).transpose(0, 2, 1, 3).reshape(N, nc2, H, W)
    return out[:, :nc], out[:, nc:2 * nc]


# ---------------- reference (pure JAX, f32) for correctness check ----------------
def _ref_conv_nchw(x, w_hwio, b):
    y = jax.lax.conv_general_dilated(
        x, w_hwio, window_strides=(1, 1), padding="SAME",
        dimension_numbers=("NCHW", "HWIO", "NCHW"))
    return y + b.reshape(1, -1, 1, 1)


def guide_correlation_ref(x, guide, params):
    if guide.shape[2:] != x.shape[2:]:
        guide = jax.image.resize(guide, guide.shape[:2] + x.shape[2:], method="nearest")
    actv = jnp.maximum(_ref_conv_nchw(guide, params["w_shared"], params["b_shared"]), 0.0)
    gamma = _ref_conv_nchw(actv, params["w_gamma"], params["b_gamma"])
    beta = _ref_conv_nchw(actv, params["w_beta"], params["b_beta"])
    return gamma, beta


if __name__ == "__main__":
    N, nc, guide_nc, H, W = 2, 4, 4, 16, 16
    nhidden = 128

    key = jax.random.PRNGKey(0)
    k = jax.random.split(key, 8)
    # Deterministic synthetic parameters (conv weights in HWIO layout, biases 1-D).
    params = {
        "w_shared": jax.random.normal(k[0], (3, 3, guide_nc, nhidden), jnp.float32) * 0.1,
        "b_shared": jax.random.normal(k[1], (nhidden,), jnp.float32) * 0.1,
        "w_gamma":  jax.random.normal(k[2], (3, 3, nhidden, nc), jnp.float32) * 0.05,
        "b_gamma":  jax.random.normal(k[3], (nc,), jnp.float32) * 0.1,
        "w_beta":   jax.random.normal(k[4], (3, 3, nhidden, nc), jnp.float32) * 0.05,
        "b_beta":   jax.random.normal(k[5], (nc,), jnp.float32) * 0.1,
    }

    x = jax.random.normal(k[6], (N, nc, H, W), jnp.float32)
    guide = jax.random.normal(k[7], (N, guide_nc, H, W), jnp.float32)

    gamma, beta = guide_correlation(x, guide, params)
    jax.block_until_ready((gamma, beta))

    gamma_ref, beta_ref = guide_correlation_ref(x, guide, params)
    # bf16 MXU operands (f32 accumulation) -> compare against f32 reference loosely.
    assert jnp.allclose(gamma, gamma_ref, atol=5e-2, rtol=5e-2), "gamma mismatch"
    assert jnp.allclose(beta, beta_ref, atol=5e-2, rtol=5e-2), "beta mismatch"

    print("KERNEL_OK")
</pallas_src>

<mosaic_0001>
module attributes {stable_mosaic.version = 11 : i64} {
  func.func @_fused_kernel(%arg0: i32, %arg1: memref<9x8x512xf32, #tpu.memory_space<vmem>>, %arg2: memref<1x8x512xf32, #tpu.memory_space<vmem>>, %arg3: memref<128x72xbf16, #tpu.memory_space<vmem>>, %arg4: memref<128x1xf32, #tpu.memory_space<vmem>>, %arg5: memref<72x128xbf16, #tpu.memory_space<vmem>>, %arg6: memref<8x1xf32, #tpu.memory_space<vmem>>, %arg7: memref<1x8x512xf32, #tpu.memory_space<vmem>>) attributes {dimension_semantics = [#tpu.dimension_semantics<parallel>], iteration_bounds = array<i64: 1>, scalar_prefetch = 0 : i64, scratch_operands = 0 : i64, tpu.core_type = #tpu.core_type<tc>, window_params = [{pipeline_mode = #tpu.pipeline_mode<synchronous>, transform_indices = @transform_0, window_bounds = array<i64: 9, 8, 512>}, {transform_indices = @transform_1, window_bounds = array<i64: 1, 8, 512>}, {pipeline_mode = #tpu.pipeline_mode<synchronous>, transform_indices = @transform_2, window_bounds = array<i64: 128, 72>}, {pipeline_mode = #tpu.pipeline_mode<synchronous>, transform_indices = @transform_3, window_bounds = array<i64: 128, 1>}, {pipeline_mode = #tpu.pipeline_mode<synchronous>, transform_indices = @transform_4, window_bounds = array<i64: 72, 128>}, {pipeline_mode = #tpu.pipeline_mode<synchronous>, transform_indices = @transform_5, window_bounds = array<i64: 8, 1>}, {transform_indices = @transform_6, window_bounds = array<i64: 1, 8, 512>}]} {
    %c0 = arith.constant 0 : index
    %c0_0 = arith.constant 0 : index
    %c0_1 = arith.constant 0 : index
    %0 = vector.load %arg2[%c0, %c0_0, %c0_1] : memref<1x8x512xf32, #tpu.memory_space<vmem>>, vector<1x8x512xf32>
    %1 = vector.shape_cast %0 : vector<1x8x512xf32> to vector<8x512xf32>
    %c0_2 = arith.constant 0 : index
    %c0_3 = arith.constant 0 : index
    %c0_4 = arith.constant 0 : index
    %2 = vector.load %arg1[%c0_2, %c0_3, %c0_4] : memref<9x8x512xf32, #tpu.memory_space<vmem>>, vector<9x8x512xf32>
    %c17_i32 = arith.constant 17 : i32
    %3 = tpu.dynamic_rotate %1 by %c17_i32 dim 1 : vector<8x512xf32>, i32 -> vector<8x512xf32>
    %4 = vector.extract_strided_slice %2 {offsets = [0, 0, 0], sizes = [1, 8, 512], strides = [1, 1, 1]} : vector<9x8x512xf32> to vector<1x8x512xf32>
    %5 = vector.shape_cast %4 : vector<1x8x512xf32> to vector<8x512xf32>
    %6 = arith.mulf %3, %5 : vector<8x512xf32>
    %c16_i32 = arith.constant 16 : i32
    %7 = tpu.dynamic_rotate %1 by %c16_i32 dim 1 : vector<8x512xf32>, i32 -> vector<8x512xf32>
    %8 = vector.extract_strided_slice %2 {offsets = [1, 0, 0], sizes = [1, 8, 512], strides = [1, 1, 1]} : vector<9x8x512xf32> to vector<1x8x512xf32>
    %9 = vector.shape_cast %8 : vector<1x8x512xf32> to vector<8x512xf32>
    %10 = arith.mulf %7, %9 : vector<8x512xf32>
    %c15_i32 = arith.constant 15 : i32
    %11 = tpu.dynamic_rotate %1 by %c15_i32 dim 1 : vector<8x512xf32>, i32 -> vector<8x512xf32>
    %12 = vector.extract_strided_slice %2 {offsets = [2, 0, 0], sizes = [1, 8, 512], strides = [1, 1, 1]} : vector<9x8x512xf32> to vector<1x8x512xf32>
    %13 = vector.shape_cast %12 : vector<1x8x512xf32> to vector<8x512xf32>
    %14 = arith.mulf %11, %13 : vector<8x512xf32>
    %c1_i32 = arith.constant 1 : i32
    %15 = tpu.dynamic_rotate %1 by %c1_i32 dim 1 : vector<8x512xf32>, i32 -> vector<8x512xf32>
    %16 = vector.extract_strided_slice %2 {offsets = [3, 0, 0], sizes = [1, 8, 512], strides = [1, 1, 1]} : vector<9x8x512xf32> to vector<1x8x512xf32>
    %17 = vector.shape_cast %16 : vector<1x8x512xf32> to vector<8x512xf32>
    %18 = arith.mulf %15, %17 : vector<8x512xf32>
    %c511_i32 = arith.constant 511 : i32
    %19 = tpu.dynamic_rotate %1 by %c511_i32 dim 1 : vector<8x512xf32>, i32 -> vector<8x512xf32>
    %20 = vector.extract_strided_slice %2 {offsets = [5, 0, 0], sizes = [1, 8, 512], strides = [1, 1, 1]} : vector<9x8x512xf32> to vector<1x8x512xf32>
    %21 = vector.shape_cast %20 : vector<1x8x512xf32> to vector<8x512xf32>
    %22 = arith.mulf %19, %21 : vector<8x512xf32>
    %c497_i32 = arith.constant 497 : i32
    %23 = tpu.dynamic_rotate %1 by %c497_i32 dim 1 : vector<8x512xf32>, i32 -> vector<8x512xf32>
    %24 = vector.extract_strided_slice %2 {offsets = [6, 0, 0], sizes = [1, 8, 512], strides = [1, 1, 1]} : vector<9x8x512xf32> to vector<1x8x512xf32>
    %25 = vector.shape_cast %24 : vector<1x8x512xf32> to vector<8x512xf32>
    %26 = arith.mulf %23, %25 : vector<8x512xf32>
    %c496_i32 = arith.constant 496 : i32
    %27 = tpu.dynamic_rotate %1 by %c496_i32 dim 1 : vector<8x512xf32>, i32 -> vector<8x512xf32>
    %28 = vector.extract_strided_slice %2 {offsets = [7, 0, 0], sizes = [1, 8, 512], strides = [1, 1, 1]} : vector<9x8x512xf32> to vector<1x8x512xf32>
    %29 = vector.shape_cast %28 : vector<1x8x512xf32> to vector<8x512xf32>
    %30 = arith.mulf %27, %29 : vector<8x512xf32>
    %c495_i32 = arith.constant 495 : i32
    %31 = tpu.dynamic_rotate %1 by %c495_i32 dim 1 : vector<8x512xf32>, i32 -> vector<8x512xf32>
    %32 = vector.extract_strided_slice %2 {offsets = [8, 0, 0], sizes = [1, 8, 512], strides = [1, 1, 1]} : vector<9x8x512xf32> to vector<1x8x512xf32>
    %33 = vector.shape_cast %32 : vector<1x8x512xf32> to vector<8x512xf32>
    %34 = arith.mulf %31, %33 : vector<8x512xf32>
    %35 = tpu.concatenate %6, %10, %14, %18, %1, %22, %26, %30, %34 in 0 : vector<8x512xf32>, vector<8x512xf32>, vector<8x512xf32>, vector<8x512xf32>, vector<8x512xf32>, vector<8x512xf32>, vector<8x512xf32>, vector<8x512xf32>, vector<8x512xf32> -> vector<72x512xf32>
    %36 = arith.truncf %35 : vector<72x512xf32> to vector<72x512xbf16>
    %c0_5 = arith.constant 0 : index
    %c0_6 = arith.constant 0 : index
    %37 = vector.load %arg3[%c0_5, %c0_6] : memref<128x72xbf16, #tpu.memory_space<vmem>>, vector<128x72xbf16>
    %cst = arith.constant dense<0.000000e+00> : vector<128x512xf32>
    %38 = tpu.matmul %37, %36, %cst {dimension_numbers = #tpu.dot_dimension_numbers<[1], [0], [0], [1], [0, 0, 1, 1], [], []>} : vector<128x72xbf16>, vector<72x512xbf16>, vector<128x512xf32> -> vector<128x512xf32>
    %c0_7 = arith.constant 0 : index
    %c0_8 = arith.constant 0 : index
    %39 = vector.load %arg4[%c0_7, %c0_8] : memref<128x1xf32, #tpu.memory_space<vmem>>, vector<128x1xf32>
    %40 = vector.broadcast %39 : vector<128x1xf32> to vector<128x512xf32>
    %41 = arith.addf %38, %40 : vector<128x512xf32>
    %cst_9 = arith.constant 0.000000e+00 : f32
    %42 = vector.broadcast %cst_9 : f32 to vector<128x512xf32>
    %43 = arith.maximumf %41, %42 : vector<128x512xf32>
    %44 = arith.truncf %43 : vector<128x512xf32> to vector<128x512xbf16>
    %c0_10 = arith.constant 0 : index
    %c0_11 = arith.constant 0 : index
    %45 = vector.load %arg5[%c0_10, %c0_11] : memref<72x128xbf16, #tpu.memory_space<vmem>>, vector<72x128xbf16>
    %cst_12 = arith.constant dense<0.000000e+00> : vector<72x512xf32>
    %46 = tpu.matmul %45, %44, %cst_12 {dimension_numbers = #tpu.dot_dimension_numbers<[1], [0], [0], [1], [0, 0, 1, 1], [], []>} : vector<72x128xbf16>, vector<128x512xbf16>, vector<72x512xf32> -> vector<72x512xf32>
    %47 = vector.extract_strided_slice %46 {offsets = [0, 0], sizes = [8, 512], strides = [1, 1]} : vector<72x512xf32> to vector<8x512xf32>
    %c17_i32_13 = arith.constant 17 : i32
    %48 = tpu.dynamic_rotate %47 by %c17_i32_13 dim 1 : vector<8x512xf32>, i32 -> vector<8x512xf32>
    %49 = vector.extract_strided_slice %2 {offsets = [0, 0, 0], sizes = [1, 8, 512], strides = [1, 1, 1]} : vector<9x8x512xf32> to vector<1x8x512xf32>
    %50 = vector.shape_cast %49 : vector<1x8x512xf32> to vector<8x512xf32>
    %51 = arith.mulf %48, %50 : vector<8x512xf32>
    %52 = vector.extract_strided_slice %46 {offsets = [8, 0], sizes = [8, 512], strides = [1, 1]} : vector<72x512xf32> to vector<8x512xf32>
    %c16_i32_14 = arith.constant 16 : i32
    %53 = tpu.dynamic_rotate %52 by %c16_i32_14 dim 1 : vector<8x512xf32>, i32 -> vector<8x512xf32>
    %54 = vector.extract_strided_slice %2 {offsets = [1, 0, 0], sizes = [1, 8, 512], strides = [1, 1, 1]} : vector<9x8x512xf32> to vector<1x8x512xf32>
    %55 = vector.shape_cast %54 : vector<1x8x512xf32> to vector<8x512xf32>
    %56 = arith.mulf %53, %55 : vector<8x512xf32>
    %57 = arith.addf %51, %56 : vector<8x512xf32>
    %58 = vector.extract_strided_slice %46 {offsets = [16, 0], sizes = [8, 512], strides = [1, 1]} : vector<72x512xf32> to vector<8x512xf32>
    %c15_i32_15 = arith.constant 15 : i32
    %59 = tpu.dynamic_rotate %58 by %c15_i32_15 dim 1 : vector<8x512xf32>, i32 -> vector<8x512xf32>
    %60 = vector.extract_strided_slice %2 {offsets = [2, 0, 0], sizes = [1, 8, 512], strides = [1, 1, 1]} : vector<9x8x512xf32> to vector<1x8x512xf32>
    %61 = vector.shape_cast %60 : vector<1x8x512xf32> to vector<8x512xf32>
    %62 = arith.mulf %59, %61 : vector<8x512xf32>
    %63 = arith.addf %57, %62 : vector<8x512xf32>
    %64 = vector.extract_strided_slice %46 {offsets = [24, 0], sizes = [8, 512], strides = [1, 1]} : vector<72x512xf32> to vector<8x512xf32>
    %c1_i32_16 = arith.constant 1 : i32
    %65 = tpu.dynamic_rotate %64 by %c1_i32_16 dim 1 : vector<8x512xf32>, i32 -> vector<8x512xf32>
    %66 = vector.extract_strided_slice %2 {offsets = [3, 0, 0], sizes = [1, 8, 512], strides = [1, 1, 1]} : vector<9x8x512xf32> to vector<1x8x512xf32>
    %67 = vector.shape_cast %66 : vector<1x8x512xf32> to vector<8x512xf32>
    %68 = arith.mulf %65, %67 : vector<8x512xf32>
    %69 = arith.addf %63, %68 : vector<8x512xf32>
    %70 = vector.extract_strided_slice %46 {offsets = [32, 0], sizes = [8, 512], strides = [1, 1]} : vector<72x512xf32> to vector<8x512xf32>
    %71 = arith.addf %69, %70 : vector<8x512xf32>
    %72 = vector.extract_strided_slice %46 {offsets = [40, 0], sizes = [8, 512], strides = [1, 1]} : vector<72x512xf32> to vector<8x512xf32>
    %c511_i32_17 = arith.constant 511 : i32
    %73 = tpu.dynamic_rotate %72 by %c511_i32_17 dim 1 : vector<8x512xf32>, i32 -> vector<8x512xf32>
    %74 = vector.extract_strided_slice %2 {offsets = [5, 0, 0], sizes = [1, 8, 512], strides = [1, 1, 1]} : vector<9x8x512xf32> to vector<1x8x512xf32>
    %75 = vector.shape_cast %74 : vector<1x8x512xf32> to vector<8x512xf32>
    %76 = arith.mulf %73, %75 : vector<8x512xf32>
    %77 = arith.addf %71, %76 : vector<8x512xf32>
    %78 = vector.extract_strided_slice %46 {offsets = [48, 0], sizes = [8, 512], strides = [1, 1]} : vector<72x512xf32> to vector<8x512xf32>
    %c497_i32_18 = arith.constant 497 : i32
    %79 = tpu.dynamic_rotate %78 by %c497_i32_18 dim 1 : vector<8x512xf32>, i32 -> vector<8x512xf32>
    %80 = vector.extract_strided_slice %2 {offsets = [6, 0, 0], sizes = [1, 8, 512], strides = [1, 1, 1]} : vector<9x8x512xf32> to vector<1x8x512xf32>
    %81 = vector.shape_cast %80 : vector<1x8x512xf32> to vector<8x512xf32>
    %82 = arith.mulf %79, %81 : vector<8x512xf32>
    %83 = arith.addf %77, %82 : vector<8x512xf32>
    %84 = vector.extract_strided_slice %46 {offsets = [56, 0], sizes = [8, 512], strides = [1, 1]} : vector<72x512xf32> to vector<8x512xf32>
    %c496_i32_19 = arith.constant 496 : i32
    %85 = tpu.dynamic_rotate %84 by %c496_i32_19 dim 1 : vector<8x512xf32>, i32 -> vector<8x512xf32>
    %86 = vector.extract_strided_slice %2 {offsets = [7, 0, 0], sizes = [1, 8, 512], strides = [1, 1, 1]} : vector<9x8x512xf32> to vector<1x8x512xf32>
    %87 = vector.shape_cast %86 : vector<1x8x512xf32> to vector<8x512xf32>
    %88 = arith.mulf %85, %87 : vector<8x512xf32>
    %89 = arith.addf %83, %88 : vector<8x512xf32>
    %90 = vector.extract_strided_slice %46 {offsets = [64, 0], sizes = [8, 512], strides = [1, 1]} : vector<72x512xf32> to vector<8x512xf32>
    %c495_i32_20 = arith.constant 495 : i32
    %91 = tpu.dynamic_rotate %90 by %c495_i32_20 dim 1 : vector<8x512xf32>, i32 -> vector<8x512xf32>
    %92 = vector.extract_strided_slice %2 {offsets = [8, 0, 0], sizes = [1, 8, 512], strides = [1, 1, 1]} : vector<9x8x512xf32> to vector<1x8x512xf32>
    %93 = vector.shape_cast %92 : vector<1x8x512xf32> to vector<8x512xf32>
    %94 = arith.mulf %91, %93 : vector<8x512xf32>
    %95 = arith.addf %89, %94 : vector<8x512xf32>
    %c0_21 = arith.constant 0 : index
    %c0_22 = arith.constant 0 : index
    %96 = vector.load %arg6[%c0_21, %c0_22] : memref<8x1xf32, #tpu.memory_space<vmem>>, vector<8x1xf32>
    %97 = vector.broadcast %96 : vector<8x1xf32> to vector<8x512xf32>
    %98 = arith.addf %95, %97 : vector<8x512xf32>
    %c0_23 = arith.constant 0 : index
    %c0_24 = arith.constant 0 : index
    %c0_25 = arith.constant 0 : index
    %99 = vector.load %arg7[%c0_23, %c0_24, %c0_25] : memref<1x8x512xf32, #tpu.memory_space<vmem>>, vector<1x8x512xf32>
    %100 = vector.shape_cast %99 : vector<1x8x512xf32> to vector<8x512xf32>
    %101 = vector.shape_cast %98 : vector<8x512xf32> to vector<1x8x512xf32>
    tpu.vector_store %arg7[%c0_23, %c0_24, %c0_25], %101 {strides = array<i32>} : memref<1x8x512xf32, #tpu.memory_space<vmem>>, vector<1x8x512xf32>,
    return
  }
  func.func @transform_0(%arg0: i32) -> (i32, i32, i32) {
    %c0_i32 = arith.constant 0 : i32
    %c0_i32_0 = arith.constant 0 : i32
    %c0_i32_1 = arith.constant 0 : i32
    %c0_i32_2 = arith.constant 0 : i32
    return %c0_i32, %c0_i32_0, %c0_i32_1 : i32, i32, i32
  }
  func.func @transform_1(%arg0: i32) -> (i32, i32, i32) {
    %c0_i32 = arith.constant 0 : i32
    %c0_i32_0 = arith.constant 0 : i32
    %c0_i32_1 = arith.constant 0 : i32
    return %arg0, %c0_i32, %c0_i32_0 : i32, i32, i32
  }
  func.func @transform_2(%arg0: i32) -> (i32, i32) {
    %c0_i32 = arith.constant 0 : i32
    %c0_i32_0 = arith.constant 0 : i32
    %c0_i32_1 = arith.constant 0 : i32
    return %c0_i32, %c0_i32_0 : i32, i32
  }
  func.func @transform_3(%arg0: i32) -> (i32, i32) {
    %c0_i32 = arith.constant 0 : i32
    %c0_i32_0 = arith.constant 0 : i32
    %c0_i32_1 = arith.constant 0 : i32
    return %c0_i32, %c0_i32_0 : i32, i32
  }
  func.func @transform_4(%arg0: i32) -> (i32, i32) {
    %c0_i32 = arith.constant 0 : i32
    %c0_i32_0 = arith.constant 0 : i32
    %c0_i32_1 = arith.constant 0 : i32
    return %c0_i32, %c0_i32_0 : i32, i32
  }
  func.func @transform_5(%arg0: i32) -> (i32, i32) {
    %c0_i32 = arith.constant 0 : i32
    %c0_i32_0 = arith.constant 0 : i32
    %c0_i32_1 = arith.constant 0 : i32
    return %c0_i32, %c0_i32_0 : i32, i32
  }
  func.func @transform_6(%arg0: i32) -> (i32, i32, i32) {
    %c0_i32 = arith.constant 0 : i32
    %c0_i32_0 = arith.constant 0 : i32
    %c0_i32_1 = arith.constant 0 : i32
    return %arg0, %c0_i32, %c0_i32_0 : i32, i32, i32
  }
}

</mosaic_0001>

<llo_original>
// kernel: tpu_custom_call.1
$region0: #{tpu_custom_call.1}
  #allocation0 [shape = 'u32[]', space=smem, size = 0x4, offset = 0x4, fixed_abs, tag = 'smem constant byte address 0x4 - core index']
  #allocation1 [shape = 'u32[144,128]{1,0:T(1,128)}', space=vmem, size = 0x12000, scoped, tag = 'internal scratch']
  %s0 = inlined_call_operand.hbm [shape: f32[9,8,512], index: 0, kind: input, shape index: {}]
  %s1 = inlined_call_operand.vmem [shape: f32[1,8,512], index: 1, kind: input, shape index: {}]
  %s2 = inlined_call_operand.vmem [shape: bf16[128,72], index: 2, kind: input, shape index: {}]
  %s3 = inlined_call_operand.vmem [shape: f32[128,1], index: 3, kind: input, shape index: {}]
  %s4 = inlined_call_operand.vmem [shape: bf16[72,128], index: 4, kind: input, shape index: {}]
  %s5 = inlined_call_operand.vmem [shape: f32[8,1], index: 5, kind: input, shape index: {}]
  %s6 = inlined_call_operand.hbm [shape: f32[1,8,512], index: 6, kind: output, shape index: {}]
  %s7 = sld [smem:[#allocation0]]
  $region38: #{tpu_custom_call.1} parent=0
    _
  %s9 = ssub.s32 1, %s7
  %s10 = scalar_select 0, %s9, %s7
  $region1: #{tpu_custom_call.1} parent=0
    #allocation2 [shape = 'u8[147456]{0}', space=vmem, size = 0x24000, scoped, tag = 'input window, operand 0, single buffered']
    #allocation3 [shape = 's32[1]{0}', space=sflag, size = 0x4, scoped, tag = 'scoped memory for tpu_custom_call.1']
    #allocation4 [shape = 's32[1]{0}', space=sflag, size = 0x4, scoped, tag = 'scoped memory for tpu_custom_call.1']
    #allocation5 [shape = 'u8[16384]{0}', space=vmem, size = 0x4000, scoped, tag = 'output window, operand 0, single buffered']
    %11 = vsyncpa [#allocation3], 0
    %12 = vsyncpa [#allocation4], 0
    // Predicated region
    $region2: #{tpu_custom_call.1} parent=1 // pred_check
      _
    $region3: #{tpu_custom_call.1} parent=1 // pred_check_branch
      %14 = sbr.rel (0) target = $region5
    $region4: #{tpu_custom_call.1} parent=1 // pred_region
      %s16 = ssub.s32 4608, 4608
      %17 = vsyncadd [#allocation3], %s16
      %s18 = sshll.u32 [#allocation2], 4
      %s19 = int_to_ptr.vmem [resolvable:$true] %s18
      %24 = dma.hbm_to_vmem [thread:$0]  %s0, 4608, %s19, [#allocation3], 512, 512, 32
    $region5: #{tpu_custom_call.1} parent=1 // pred_fallthru
      _
    // Predicated region
    $region6: #{tpu_custom_call.1} parent=1 // pred_check
      _
    $region7: #{tpu_custom_call.1} parent=1 // pred_check_branch
      %26 = sbr.rel (0) target = $region9
    $region8: #{tpu_custom_call.1} parent=1 // pred_region
      _
    $region9: #{tpu_custom_call.1} parent=1 // pred_fallthru
      _
    // Predicated region
    $region10: #{tpu_custom_call.1} parent=1 // pred_check
      _
    $region11: #{tpu_custom_call.1} parent=1 // pred_check_branch
      %28 = sbr.rel (0) target = $region13
    $region12: #{tpu_custom_call.1} parent=1 // pred_region
      _
    $region13: #{tpu_custom_call.1} parent=1 // pred_fallthru
      _
    // Predicated region
    $region14: #{tpu_custom_call.1} parent=1 // pred_check
      _
    $region15: #{tpu_custom_call.1} parent=1 // pred_check_branch
      %30 = sbr.rel (0) target = $region17
    $region16: #{tpu_custom_call.1} parent=1 // pred_region
      _
    $region17: #{tpu_custom_call.1} parent=1 // pred_fallthru
      _
    // Predicated region
    $region18: #{tpu_custom_call.1} parent=1 // pred_check
      _
    $region19: #{tpu_custom_call.1} parent=1 // pred_check_branch
      %32 = sbr.rel (0) target = $region21
    $region20: #{tpu_custom_call.1} parent=1 // pred_region
      _
    $region21: #{tpu_custom_call.1} parent=1 // pred_fallthru
      _
    // Predicated region
    $region22: #{tpu_custom_call.1} parent=1 // pred_check
      _
    $region23: #{tpu_custom_call.1} parent=1 // pred_check_branch
      %34 = sbr.rel (0) target = $region25
    $region24: #{tpu_custom_call.1} parent=1 // pred_region
      _
    $region25: #{tpu_custom_call.1} parent=1 // pred_fallthru
      _
    // Predicated region
    $region26: #{tpu_custom_call.1} parent=1 // pred_check
      _
    $region27: #{tpu_custom_call.1} parent=1 // pred_check_branch
      %36 = sbr.rel (0) target = $region29
    $region28: #{tpu_custom_call.1} parent=1 // pred_region
      %37 = dma.done [#allocation3], 4608
    $region29: #{tpu_custom_call.1} parent=1 // pred_fallthru
      _
    %v39 = vld [vmem:[%s1] sm:$0xff]
    %v40 = vld [vmem:[%s1 + $0x8] sm:$0xff]
    %v41 = vld [vmem:[%s1 + $0x10] sm:$0xff]
    %v42 = vld [vmem:[%s1 + $0x18] sm:$0xff]
    %v43 = vld [vmem:[#allocation2] sm:$0xff]
    %v44 = vld [vmem:[#allocation2 + $0x8] sm:$0xff]
    %v45 = vld [vmem:[#allocation2 + $0x10] sm:$0xff]
    %v46 = vld [vmem:[#allocation2 + $0x18] sm:$0xff]
    %v47 = vld [vmem:[#allocation2 + $0x20] sm:$0xff]
    %v48 = vld [vmem:[#allocation2 + $0x28] sm:$0xff]
    %v49 = vld [vmem:[#allocation2 + $0x30] sm:$0xff]
    %v50 = vld [vmem:[#allocation2 + $0x38] sm:$0xff]
    %v51 = vld [vmem:[#allocation2 + $0x40] sm:$0xff]
    %v52 = vld [vmem:[#allocation2 + $0x48] sm:$0xff]
    %v53 = vld [vmem:[#allocation2 + $0x50] sm:$0xff]
    %v54 = vld [vmem:[#allocation2 + $0x58] sm:$0xff]
    %v55 = vld [vmem:[#allocation2 + $0x60] sm:$0xff]
    %v56 = vld [vmem:[#allocation2 + $0x68] sm:$0xff]
    %v57 = vld [vmem:[#allocation2 + $0x70] sm:$0xff]
    %v58 = vld [vmem:[#allocation2 + $0x78] sm:$0xff]
    %v59 = vld [vmem:[#allocation2 + $0xa0] sm:$0xff]
    %v60 = vld [vmem:[#allocation2 + $0xa8] sm:$0xff]
    %v61 = vld [vmem:[#allocation2 + $0xb0] sm:$0xff]
    %v62 = vld [vmem:[#allocation2 + $0xb8] sm:$0xff]
    %v63 = vld [vmem:[#allocation2 + $0xc0] sm:$0xff]
    %v64 = vld [vmem:[#allocation2 + $0xc8] sm:$0xff]
    %v65 = vld [vmem:[#allocation2 + $0xd0] sm:$0xff]
    %v66 = vld [vmem:[#allocation2 + $0xd8] sm:$0xff]
    %v67 = vld [vmem:[#allocation2 + $0xe0] sm:$0xff]
    %v68 = vld [vmem:[#allocation2 + $0xe8] sm:$0xff]
    %v69 = vld [vmem:[#allocation2 + $0xf0] sm:$0xff]
    %v70 = vld [vmem:[#allocation2 + $0xf8] sm:$0xff]
    %v71 = vld [vmem:[#allocation2 + $0x100] sm:$0xff]
    %v72 = vld [vmem:[#allocation2 + $0x108] sm:$0xff]
    %v73 = vld [vmem:[#allocation2 + $0x110] sm:$0xff]
    %v74 = vld [vmem:[#allocation2 + $0x118] sm:$0xff]
    %75 = vrot.lane.b32.xlu0 %v39, 17
    %v76 = vpop.permute.xlu0 %75
    %77 = vrot.lane.b32.xlu0 %v40, 17
    %v78 = vpop.permute.xlu0 %77
    %79 = vrot.lane.b32.xlu0 %v41, 17
    %v80 = vpop.permute.xlu0 %79
    %81 = vrot.lane.b32.xlu0 %v42, 17
    %v82 = vpop.permute.xlu0 %81
    %v83 = vlaneseq
    %v84 = vand.u32 %v83, 127
    %vm85 = vcmp.lt.s32.totalorder %v84, 17
    %v86 = vsel %vm85, %v80, %v82
    %v87 = vsel %vm85, %v78, %v80
    %v88 = vsel %vm85, %v76, %v78
    %v89 = vsel %vm85, %v82, %v76
    %v90 = vmul.f32 %v89, %v43
    %v91 = vmul.f32 %v88, %v44
    %v92 = vmul.f32 %v87, %v45
    %v93 = vmul.f32 %v86, %v46
    %94 = vrot.lane.b32.xlu0 %v39, 16
    %v95 = vpop.permute.xlu0 %94
    %96 = vrot.lane.b32.xlu0 %v40, 16
    %v97 = vpop.permute.xlu0 %96
    %98 = vrot.lane.b32.xlu0 %v41, 16
    %v99 = vpop.permute.xlu0 %98
    %100 = vrot.lane.b32.xlu0 %v42, 16
    %v101 = vpop.permute.xlu0 %100
    %vm102 = vcmp.lt.s32.totalorder %v84, 16
    %v103 = vsel %vm102, %v99, %v101
    %v104 = vsel %vm102, %v97, %v99
    %v105 = vsel %vm102, %v95, %v97
    %v106 = vsel %vm102, %v101, %v95
    %v107 = vmul.f32 %v106, %v47
    %v108 = vmul.f32 %v105, %v48
    %v109 = vmul.f32 %v104, %v49
    %v110 = vmul.f32 %v103, %v50
    %111 = vrot.lane.b32.xlu0 %v39, 15
    %v112 = vpop.permute.xlu0 %111
    %113 = vrot.lane.b32.xlu0 %v40, 15
    %v114 = vpop.permute.xlu0 %113
    %115 = vrot.lane.b32.xlu0 %v41, 15
    %v116 = vpop.permute.xlu0 %115
    %117 = vrot.lane.b32.xlu0 %v42, 15
    %v118 = vpop.permute.xlu0 %117
    %vm119 = vcmp.lt.s32.totalorder %v84, 15
    %v120 = vsel %vm119, %v116, %v118
    %v121 = vsel %vm119, %v114, %v116
    %v122 = vsel %vm119, %v112, %v114
    %v123 = vsel %vm119, %v118, %v112
    %v124 = vmul.f32 %v123, %v51
    %v125 = vmul.f32 %v122, %v52
    %v126 = vmul.f32 %v121, %v53
    %v127 = vmul.f32 %v120, %v54
    %128 = vrot.lane.b32.xlu0 %v39, 1
    %v129 = vpop.permute.xlu0 %128
    %130 = vrot.lane.b32.xlu0 %v40, 1
    %v131 = vpop.permute.xlu0 %130
    %132 = vrot.lane.b32.xlu0 %v41, 1
    %v133 = vpop.permute.xlu0 %132
    %134 = vrot.lane.b32.xlu0 %v42, 1
    %v135 = vpop.permute.xlu0 %134
    %vm136 = vcmp.lt.s32.totalorder %v84, 1
    %v137 = vsel %vm136, %v133, %v135
    %v138 = vsel %vm136, %v131, %v133
    %v139 = vsel %vm136, %v129, %v131
    %v140 = vsel %vm136, %v135, %v129
    %v141 = vmul.f32 %v140, %v55
    %v142 = vmul.f32 %v139, %v56
    %v143 = vmul.f32 %v138, %v57
    %v144 = vmul.f32 %v137, %v58
    %145 = vrot.lane.b32.xlu0 %v39, 127
    %v146 = vpop.permute.xlu0 %145
    %147 = vrot.lane.b32.xlu0 %v40, 127
    %v148 = vpop.permute.xlu0 %147
    %149 = vrot.lane.b32.xlu0 %v41, 127
    %v150 = vpop.permute.xlu0 %149
    %151 = vrot.lane.b32.xlu0 %v42, 127
    %v152 = vpop.permute.xlu0 %151
    %vm153 = vcmp.lt.s32.totalorder %v84, 127
    %v154 = vsel %vm153, %v150, %v152
    %v155 = vsel %vm153, %v148, %v150
    %v156 = vsel %vm153, %v146, %v148
    %v157 = vsel %vm153, %v152, %v146
    %v158 = vmul.f32 %v156, %v59
    %v159 = vmul.f32 %v155, %v60
    %v160 = vmul.f32 %v154, %v61
    %v161 = vmul.f32 %v157, %v62
    %162 = vrot.lane.b32.xlu0 %v39, 113
    %v163 = vpop.permute.xlu0 %162
    %164 = vrot.lane.b32.xlu0 %v40, 113
    %v165 = vpop.permute.xlu0 %164
    %166 = vrot.lane.b32.xlu0 %v41, 113
    %v167 = vpop.permute.xlu0 %166
    %168 = vrot.lane.b32.xlu0 %v42, 113
    %v169 = vpop.permute.xlu0 %168
    %vm170 = vcmp.lt.s32.totalorder %v84, 113
    %v171 = vsel %vm170, %v167, %v169
    %v172 = vsel %vm170, %v165, %v167
    %v173 = vsel %vm170, %v163, %v165
    %v174 = vsel %vm170, %v169, %v163
    %v175 = vmul.f32 %v173, %v63
    %v176 = vmul.f32 %v172, %v64
    %v177 = vmul.f32 %v171, %v65
    %v178 = vmul.f32 %v174, %v66
    %179 = vrot.lane.b32.xlu0 %v39, 112
    %v180 = vpop.permute.xlu0 %179
    %181 = vrot.lane.b32.xlu0 %v40, 112
    %v182 = vpop.permute.xlu0 %181
    %183 = vrot.lane.b32.xlu0 %v41, 112
    %v184 = vpop.permute.xlu0 %183
    %185 = vrot.lane.b32.xlu0 %v42, 112
    %v186 = vpop.permute.xlu0 %185
    %vm187 = vcmp.lt.s32.totalorder %v84, 112
    %v188 = vsel %vm187, %v184, %v186
    %v189 = vsel %vm187, %v182, %v184
    %v190 = vsel %vm187, %v180, %v182
    %v191 = vsel %vm187, %v186, %v180
    %v192 = vmul.f32 %v190, %v67
    %v193 = vmul.f32 %v189, %v68
    %v194 = vmul.f32 %v188, %v69
    %v195 = vmul.f32 %v191, %v70
    %196 = vrot.lane.b32.xlu0 %v39, 111
    %v197 = vpop.permute.xlu0 %196
    %198 = vrot.lane.b32.xlu0 %v40, 111
    %v199 = vpop.permute.xlu0 %198
    %200 = vrot.lane.b32.xlu0 %v41, 111
    %v201 = vpop.permute.xlu0 %200
    %202 = vrot.lane.b32.xlu0 %v42, 111
    %v203 = vpop.permute.xlu0 %202
    %vm204 = vcmp.lt.s32.totalorder %v84, 111
    %v205 = vsel %vm204, %v201, %v203
    %v206 = vsel %vm204, %v199, %v201
    %v207 = vsel %vm204, %v197, %v199
    %v208 = vsel %vm204, %v203, %v197
    %v209 = vmul.f32 %v207, %v71
    %v210 = vmul.f32 %v206, %v72
    %v211 = vmul.f32 %v205, %v73
    %v212 = vmul.f32 %v208, %v74
    %v213 = vpack.c.bf16 %v107, %v90
    %v214 = vpack.c.bf16 %v108, %v91
    %v215 = vpack.c.bf16 %v109, %v92
    %v216 = vpack.c.bf16 %v110, %v93
    %v217 = vpack.c.bf16 %v141, %v124
    %v218 = vpack.c.bf16 %v142, %v125
    %v219 = vpack.c.bf16 %v143, %v126
    %v220 = vpack.c.bf16 %v144, %v127
    %v221 = vpack.c.bf16 %v158, %v39
    %v222 = vpack.c.bf16 %v159, %v40
    %v223 = vpack.c.bf16 %v160, %v41
    %v224 = vpack.c.bf16 %v161, %v42
    %v225 = vpack.c.bf16 %v192, %v175
    %v226 = vpack.c.bf16 %v193, %v176
    %v227 = vpack.c.bf16 %v194, %v177
    %v228 = vpack.c.bf16 %v195, %v178
    %v229 = vpack.c.bf16 %v209, %v209
    %v230 = vpack.c.bf16 %v210, %v210
    %v231 = vpack.c.bf16 %v211, %v211
    %v232 = vpack.c.bf16 %v212, %v212
    %v233 = vld [vmem:[%s2] sm:$0xf]
    %v234 = vld [vmem:[%s2 + $0x4] sm:$0xf]
    %v235 = vld [vmem:[%s2 + $0x8] sm:$0xf]
    %v236 = vld [vmem:[%s2 + $0xc] sm:$0xf]
    %v237 = vld [vmem:[%s2 + $0x10] sm:$0xf]
    %v238 = vld [vmem:[%s2 + $0x14] sm:$0xf]
    %v239 = vld [vmem:[%s2 + $0x18] sm:$0xf]
    %v240 = vld [vmem:[%s2 + $0x1c] sm:$0xf]
    %v241 = vld [vmem:[%s2 + $0x20] sm:$0xf]
    %v242 = vld [vmem:[%s2 + $0x24] sm:$0xf]
    %v243 = vld [vmem:[%s2 + $0x28] sm:$0xf]
    %v244 = vld [vmem:[%s2 + $0x2c] sm:$0xf]
    %v245 = vld [vmem:[%s2 + $0x30] sm:$0xf]
    %v246 = vld [vmem:[%s2 + $0x34] sm:$0xf]
    %v247 = vld [vmem:[%s2 + $0x38] sm:$0xf]
    %v248 = vld [vmem:[%s2 + $0x3c] sm:$0xf]
    %v249 = vld [vmem:[%s3] sm:$0xff]
    %v250 = vld [vmem:[%s3 + $0x8] sm:$0xff]
    %v251 = vld [vmem:[%s3 + $0x10] sm:$0xff]
    %v252 = vld [vmem:[%s3 + $0x18] sm:$0xff]
    %v253 = vld [vmem:[%s3 + $0x20] sm:$0xff]
    %v254 = vld [vmem:[%s3 + $0x28] sm:$0xff]
    %v255 = vld [vmem:[%s3 + $0x30] sm:$0xff]
    %v256 = vld [vmem:[%s3 + $0x38] sm:$0xff]
    %v257 = vld [vmem:[%s3 + $0x40] sm:$0xff]
    %v258 = vld [vmem:[%s3 + $0x48] sm:$0xff]
    %v259 = vld [vmem:[%s3 + $0x50] sm:$0xff]
    %v260 = vld [vmem:[%s3 + $0x58] sm:$0xff]
    %v261 = vld [vmem:[%s3 + $0x60] sm:$0xff]
    %v262 = vld [vmem:[%s3 + $0x68] sm:$0xff]
    %v263 = vld [vmem:[%s3 + $0x70] sm:$0xff]
    %v264 = vld [vmem:[%s3 + $0x78] sm:$0xff]
    %266 = vset.pattern.permute.xlu0 0
    %267 = vperm.xlu0 %266, %v249
    %v268 = vpop.permute.xlu0 %267
    %271 = vset.pattern.permute.xlu0 0
    %272 = vperm.xlu0 %271, %v250
    %v273 = vpop.permute.xlu0 %272
    %276 = vset.pattern.permute.xlu0 0
    %277 = vperm.xlu0 %276, %v251
    %v278 = vpop.permute.xlu0 %277
    %281 = vset.pattern.permute.xlu0 0
    %282 = vperm.xlu0 %281, %v252
    %v283 = vpop.permute.xlu0 %282
    %286 = vset.pattern.permute.xlu0 0
    %287 = vperm.xlu0 %286, %v253
    %v288 = vpop.permute.xlu0 %287
    %291 = vset.pattern.permute.xlu0 0
    %292 = vperm.xlu0 %291, %v254
    %v293 = vpop.permute.xlu0 %292
    %296 = vset.pattern.permute.xlu0 0
    %297 = vperm.xlu0 %296, %v255
    %v298 = vpop.permute.xlu0 %297
    %301 = vset.pattern.permute.xlu0 0
    %302 = vperm.xlu0 %301, %v256
    %v303 = vpop.permute.xlu0 %302
    %306 = vset.pattern.permute.xlu0 0
    %307 = vperm.xlu0 %306, %v257
    %v308 = vpop.permute.xlu0 %307
    %311 = vset.pattern.permute.xlu0 0
    %312 = vperm.xlu0 %311, %v258
    %v313 = vpop.permute.xlu0 %312
    %316 = vset.pattern.permute.xlu0 0
    %317 = vperm.xlu0 %316, %v259
    %v318 = vpop.permute.xlu0 %317
    %321 = vset.pattern.permute.xlu0 0
    %322 = vperm.xlu0 %321, %v260
    %v323 = vpop.permute.xlu0 %322
    %326 = vset.pattern.permute.xlu0 0
    %327 = vperm.xlu0 %326, %v261
    %v328 = vpop.permute.xlu0 %327
    %331 = vset.pattern.permute.xlu0 0
    %332 = vperm.xlu0 %331, %v262
    %v333 = vpop.permute.xlu0 %332
    %336 = vset.pattern.permute.xlu0 0
    %337 = vperm.xlu0 %336, %v263
    %v338 = vpop.permute.xlu0 %337
    %341 = vset.pattern.permute.xlu0 0
    %342 = vperm.xlu0 %341, %v264
    %v343 = vpop.permute.xlu0 %342
    %v361 = vunpack.c.l.b16 %v233
    %v362 = vunpack.c.l.b16 %v234
    %v363 = vunpack.c.l.b16 %v235
    %v364 = vunpack.c.l.b16 %v236
    %v365 = vunpack.c.l.b16 %v237
    %v366 = vunpack.c.l.b16 %v238
    %v367 = vunpack.c.l.b16 %v239
    %v368 = vunpack.c.l.b16 %v240
    %v369 = vunpack.c.l.b16 %v241
    %v370 = vunpack.c.l.b16 %v242
    %v371 = vunpack.c.l.b16 %v243
    %v372 = vunpack.c.l.b16 %v244
    %v373 = vunpack.c.l.b16 %v245
    %v374 = vunpack.c.l.b16 %v246
    %v375 = vunpack.c.l.b16 %v247
    %v376 = vunpack.c.l.b16 %v248
    %v377 = vpack.c.b16 %v362, %v361
    %v378 = vpack.c.b16 %v364, %v363
    %v379 = vpack.c.b16 %v366, %v365
    %v380 = vpack.c.b16 %v368, %v367
    %v381 = vpack.c.b16 %v370, %v369
    %v382 = vpack.c.b16 %v372, %v371
    %v383 = vpack.c.b16 %v374, %v373
    %v384 = vpack.c.b16 %v376, %v375
    %vm385 = vcmask 588800
    %v387 = vsel %vm385, %v377, 0
    %v390 = vsel %vm385, %v378, 0
    %v393 = vsel %vm385, %v379, 0
    %v396 = vsel %vm385, %v380, 0
    %v399 = vsel %vm385, %v381, 0
    %v402 = vsel %vm385, %v382, 0
    %v405 = vsel %vm385, %v383, 0
    %v408 = vsel %vm385, %v384, 0
    %vm410 = vcmask 1043456
    %v412 = vsel %vm410, %v229, 0
    %v415 = vsel %vm410, %v230, 0
    %v418 = vsel %vm410, %v231, 0
    %v421 = vsel %vm410, %v232, 0
    %423 = vmatprep.subr.bf16.mxu0 0
    %424 = vmatpush1.bf16.msra.mxu0 0
    %425 = vmatprep.subr.bf16.mxu0 0
    %426 = vmatpush1.bf16.msra.mxu0 0
    %427 = vmatprep.subr.bf16.mxu0 0
    %428 = vmatpush1.bf16.msra.mxu0 0
    %429 = vmatprep.subr.bf16.mxu0 %v415
    %430 = vmatpush1.bf16.msra.mxu0 %v412
    %431 = vmatprep.subr.bf16.mxu0 %v226
    %432 = vmatpush1.bf16.msra.mxu0 %v225
    %433 = vmatprep.subr.bf16.mxu0 %v222
    %434 = vmatpush1.bf16.msra.mxu0 %v221
    %435 = vmatprep.subr.bf16.mxu0 %v218
    %436 = vmatpush1.bf16.msra.mxu0 %v217
    %437 = vmatprep.subr.bf16.mxu0 %v214
    %438 = vmatpush1.bf16.msra.mxu0 %v213
    %439 = vmatprep.subr.bf16.mxu0 0
    %440 = vmatpush2.bf16.msra.mxu0 0
    %441 = vmatprep.subr.bf16.mxu0 0
    %442 = vmatpush2.bf16.msra.mxu0 0
    %443 = vmatprep.subr.bf16.mxu0 0
    %444 = vmatpush2.bf16.msra.mxu0 0
    %445 = vmatprep.subr.bf16.mxu0 0
    %446 = vmatpush2.bf16.msra.mxu0 0
    %447 = vmatprep.subr.bf16.mxu0 0
    %448 = vmatpush2.bf16.msra.mxu0 0
    %449 = vmatprep.subr.bf16.mxu0 0
    %450 = vmatpush2.bf16.msra.mxu0 0
    %451 = vmatprep.subr.bf16.mxu0 0
    %452 = vmatpush2.bf16.msra.mxu0 0
    %453 = vmatprep.subr.bf16.mxu0 0
    %454 = vmatpush2.bf16.msra.mxu0 0
    %455 = vmatprep.mubr.bf16.mxu0 0
    %456 = vmatmul.mubr.bf16.gmra.mxu0 %v387
    %v457 = vpop.f32.mrf.mxu0
    %v458 = vadd.f32 %v268, %v457
    %v459 = vpop.f32.mrf.mxu0
    %v460 = vadd.f32 %v268, %v459
    %v461 = vpop.f32.mrf.mxu0
    %v462 = vadd.f32 %v273, %v461
    %v463 = vpop.f32.mrf.mxu0
    %v464 = vadd.f32 %v273, %v463
    %465 = vmatprep.mubr.bf16.mxu0 0
    %466 = vmatmul.mubr.bf16.gmra.mxu0 %v390
    %v467 = vpop.f32.mrf.mxu0
    %v468 = vadd.f32 %v278, %v467
    %v469 = vpop.f32.mrf.mxu0
    %v470 = vadd.f32 %v278, %v469
    %v471 = vpop.f32.mrf.mxu0
    %v472 = vadd.f32 %v283, %v471
    %v473 = vpop.f32.mrf.mxu0
    %v474 = vadd.f32 %v283, %v473
    %475 = vmatprep.mubr.bf16.mxu0 0
    %476 = vmatmul.mubr.bf16.gmra.mxu0 %v393
    %v477 = vpop.f32.mrf.mxu0
    %v478 = vadd.f32 %v288, %v477
    %v479 = vpop.f32.mrf.mxu0
    %v480 = vadd.f32 %v288, %v479
    %v481 = vpop.f32.mrf.mxu0
    %v482 = vadd.f32 %v293, %v481
    %v483 = vpop.f32.mrf.mxu0
    %v484 = vadd.f32 %v293, %v483
    %485 = vmatprep.mubr.bf16.mxu0 0
    %486 = vmatmul.mubr.bf16.gmra.mxu0 %v396
    %v487 = vpop.f32.mrf.mxu0
    %v488 = vadd.f32 %v298, %v487
    %v489 = vpop.f32.mrf.mxu0
    %v490 = vadd.f32 %v298, %v489
    %v491 = vpop.f32.mrf.mxu0
    %v492 = vadd.f32 %v303, %v491
    %v493 = vpop.f32.mrf.mxu0
    %v494 = vadd.f32 %v303, %v493
    %495 = vmatprep.mubr.bf16.mxu0 0
    %496 = vmatmul.mubr.bf16.gmra.mxu0 %v399
    %v497 = vpop.f32.mrf.mxu0
    %v498 = vadd.f32 %v308, %v497
    %v499 = vpop.f32.mrf.mxu0
    %v500 = vadd.f32 %v308, %v499
    %v501 = vpop.f32.mrf.mxu0
    %v502 = vadd.f32 %v313, %v501
    %v503 = vpop.f32.mrf.mxu0
    %v504 = vadd.f32 %v313, %v503
    %505 = vmatprep.mubr.bf16.mxu0 0
    %506 = vmatmul.mubr.bf16.gmra.mxu0 %v402
    %v507 = vpop.f32.mrf.mxu0
    %v508 = vadd.f32 %v318, %v507
    %v509 = vpop.f32.mrf.mxu0
    %v510 = vadd.f32 %v318, %v509
    %v511 = vpop.f32.mrf.mxu0
    %v512 = vadd.f32 %v323, %v511
    %v513 = vpop.f32.mrf.mxu0
    %v514 = vadd.f32 %v323, %v513
    %515 = vmatprep.mubr.bf16.mxu0 0
    %516 = vmatmul.mubr.bf16.gmra.mxu0 %v405
    %v517 = vpop.f32.mrf.mxu0
    %v518 = vadd.f32 %v328, %v517
    %v519 = vpop.f32.mrf.mxu0
    %v520 = vadd.f32 %v328, %v519
    %v521 = vpop.f32.mrf.mxu0
    %v522 = vadd.f32 %v333, %v521
    %v523 = vpop.f32.mrf.mxu0
    %v524 = vadd.f32 %v333, %v523
    %525 = vmatprep.mubr.bf16.mxu0 0
    %526 = vmatmul.mubr.bf16.gmra.mxu0 %v408
    %v527 = vpop.f32.mrf.mxu0
    %v528 = vadd.f32 %v338, %v527
    %v529 = vpop.f32.mrf.mxu0
    %v530 = vadd.f32 %v338, %v529
    %v531 = vpop.f32.mrf.mxu0
    %v532 = vadd.f32 %v343, %v531
    %v533 = vpop.f32.mrf.mxu0
    %v534 = vadd.f32 %v343, %v533
    %535 = vdwg.mxu0
    %536 = vmatprep.subr.bf16.mxu0 0
    %537 = vmatpush1.bf16.msra.mxu0 0
    %538 = vmatprep.subr.bf16.mxu0 0
    %539 = vmatpush1.bf16.msra.mxu0 0
    %540 = vmatprep.subr.bf16.mxu0 0
    %541 = vmatpush1.bf16.msra.mxu0 0
    %542 = vmatprep.subr.bf16.mxu0 %v421
    %543 = vmatpush1.bf16.msra.mxu0 %v418
    %544 = vmatprep.subr.bf16.mxu0 %v228
    %545 = vmatpush1.bf16.msra.mxu0 %v227
    %546 = vmatprep.subr.bf16.mxu0 %v224
    %547 = vmatpush1.bf16.msra.mxu0 %v223
    %548 = vmatprep.subr.bf16.mxu0 %v220
    %549 = vmatpush1.bf16.msra.mxu0 %v219
    %550 = vmatprep.subr.bf16.mxu0 %v216
    %551 = vmatpush1.bf16.msra.mxu0 %v215
    %552 = vmatprep.subr.bf16.mxu0 0
    %553 = vmatpush2.bf16.msra.mxu0 0
    %554 = vmatprep.subr.bf16.mxu0 0
    %555 = vmatpush2.bf16.msra.mxu0 0
    %556 = vmatprep.subr.bf16.mxu0 0
    %557 = vmatpush2.bf16.msra.mxu0 0
    %558 = vmatprep.subr.bf16.mxu0 0
    %559 = vmatpush2.bf16.msra.mxu0 0
    %560 = vmatprep.subr.bf16.mxu0 0
    %561 = vmatpush2.bf16.msra.mxu0 0
    %562 = vmatprep.subr.bf16.mxu0 0
    %563 = vmatpush2.bf16.msra.mxu0 0
    %564 = vmatprep.subr.bf16.mxu0 0
    %565 = vmatpush2.bf16.msra.mxu0 0
    %566 = vmatprep.subr.bf16.mxu0 0
    %567 = vmatpush2.bf16.msra.mxu0 0
    %568 = vmatprep.mubr.bf16.mxu0 0
    %569 = vmatmul.mubr.bf16.gmra.mxu0 %v387
    %v570 = vpop.f32.mrf.mxu0
    %v571 = vadd.f32 %v268, %v570
    %v572 = vpop.f32.mrf.mxu0
    %v573 = vadd.f32 %v268, %v572
    %v574 = vpop.f32.mrf.mxu0
    %v575 = vadd.f32 %v273, %v574
    %v576 = vpop.f32.mrf.mxu0
    %v577 = vadd.f32 %v273, %v576
    %578 = vmatprep.mubr.bf16.mxu0 0
    %579 = vmatmul.mubr.bf16.gmra.mxu0 %v390
    %v580 = vpop.f32.mrf.mxu0
    %v581 = vadd.f32 %v278, %v580
    %v582 = vpop.f32.mrf.mxu0
    %v583 = vadd.f32 %v278, %v582
    %v584 = vpop.f32.mrf.mxu0
    %v585 = vadd.f32 %v283, %v584
    %v586 = vpop.f32.mrf.mxu0
    %v587 = vadd.f32 %v283, %v586
    %588 = vmatprep.mubr.bf16.mxu0 0
    %589 = vmatmul.mubr.bf16.gmra.mxu0 %v393
    %v590 = vpop.f32.mrf.mxu0
    %v591 = vadd.f32 %v288, %v590
    %v592 = vpop.f32.mrf.mxu0
    %v593 = vadd.f32 %v288, %v592
    %v594 = vpop.f32.mrf.mxu0
    %v595 = vadd.f32 %v293, %v594
    %v596 = vpop.f32.mrf.mxu0
    %v597 = vadd.f32 %v293, %v596
    %598 = vmatprep.mubr.bf16.mxu0 0
    %599 = vmatmul.mubr.bf16.gmra.mxu0 %v396
    %v600 = vpop.f32.mrf.mxu0
    %v601 = vadd.f32 %v298, %v600
    %v602 = vpop.f32.mrf.mxu0
    %v603 = vadd.f32 %v298, %v602
    %v604 = vpop.f32.mrf.mxu0
    %v605 = vadd.f32 %v303, %v604
    %v606 = vpop.f32.mrf.mxu0
    %v607 = vadd.f32 %v303, %v606
    %608 = vmatprep.mubr.bf16.mxu0 0
    %609 = vmatmul.mubr.bf16.gmra.mxu0 %v399
    %v610 = vpop.f32.mrf.mxu0
    %v611 = vadd.f32 %v308, %v610
    %v612 = vpop.f32.mrf.mxu0
    %v613 = vadd.f32 %v308, %v612
    %v614 = vpop.f32.mrf.mxu0
    %v615 = vadd.f32 %v313, %v614
    %v616 = vpop.f32.mrf.mxu0
    %v617 = vadd.f32 %v313, %v616
    %618 = vmatprep.mubr.bf16.mxu0 0
    %619 = vmatmul.mubr.bf16.gmra.mxu0 %v402
    %v620 = vpop.f32.mrf.mxu0
    %v621 = vadd.f32 %v318, %v620
    %v622 = vpop.f32.mrf.mxu0
    %v623 = vadd.f32 %v318, %v622
    %v624 = vpop.f32.mrf.mxu0
    %v625 = vadd.f32 %v323, %v624
    %v626 = vpop.f32.mrf.mxu0
    %v627 = vadd.f32 %v323, %v626
    %628 = vmatprep.mubr.bf16.mxu0 0
    %629 = vmatmul.mubr.bf16.gmra.mxu0 %v405
    %v630 = vpop.f32.mrf.mxu0
    %v631 = vadd.f32 %v328, %v630
    %v632 = vpop.f32.mrf.mxu0
    %v633 = vadd.f32 %v328, %v632
    %v634 = vpop.f32.mrf.mxu0
    %v635 = vadd.f32 %v333, %v634
    %v636 = vpop.f32.mrf.mxu0
    %v637 = vadd.f32 %v333, %v636
    %638 = vmatprep.mubr.bf16.mxu0 0
    %639 = vmatmul.mubr.bf16.gmra.mxu0 %v408
    %v640 = vpop.f32.mrf.mxu0
    %v641 = vadd.f32 %v338, %v640
    %v642 = vpop.f32.mrf.mxu0
    %v643 = vadd.f32 %v338, %v642
    %v644 = vpop.f32.mrf.mxu0
    %v645 = vadd.f32 %v343, %v644
    %v646 = vpop.f32.mrf.mxu0
    %v647 = vadd.f32 %v343, %v646
    %648 = vdwg.mxu0
    %v649 = vmax.f32 %v458, 0.0
    %v650 = vmax.f32 %v460, 0.0
    %v651 = vmax.f32 %v571, 0.0
    %v652 = vmax.f32 %v573, 0.0
    %v653 = vmax.f32 %v462, 0.0
    %v654 = vmax.f32 %v464, 0.0
    %v655 = vmax.f32 %v575, 0.0
    %v656 = vmax.f32 %v577, 0.0
    %v657 = vmax.f32 %v468, 0.0
    %v658 = vmax.f32 %v470, 0.0
    %v659 = vmax.f32 %v581, 0.0
    %v660 = vmax.f32 %v583, 0.0
    %v661 = vmax.f32 %v472, 0.0
    %v662 = vmax.f32 %v474, 0.0
    %v663 = vmax.f32 %v585, 0.0
    %v664 = vmax.f32 %v587, 0.0
    %v665 = vmax.f32 %v478, 0.0
    %v666 = vmax.f32 %v480, 0.0
    %v667 = vmax.f32 %v591, 0.0
    %v668 = vmax.f32 %v593, 0.0
    %v669 = vmax.f32 %v482, 0.0
    %v670 = vmax.f32 %v484, 0.0
    %v671 = vmax.f32 %v595, 0.0
    %v672 = vmax.f32 %v597, 0.0
    %v673 = vmax.f32 %v488, 0.0
    %v674 = vmax.f32 %v490, 0.0
    %v675 = vmax.f32 %v601, 0.0
    %v676 = vmax.f32 %v603, 0.0
    %v677 = vmax.f32 %v492, 0.0
    %v678 = vmax.f32 %v494, 0.0
    %v679 = vmax.f32 %v605, 0.0
    %v680 = vmax.f32 %v607, 0.0
    %v681 = vmax.f32 %v498, 0.0
    %v682 = vmax.f32 %v500, 0.0
    %v683 = vmax.f32 %v611, 0.0
    %v684 = vmax.f32 %v613, 0.0
    %v685 = vmax.f32 %v502, 0.0
    %v686 = vmax.f32 %v504, 0.0
    %v687 = vmax.f32 %v615, 0.0
    %v688 = vmax.f32 %v617, 0.0
    %v689 = vmax.f32 %v508, 0.0
    %v690 = vmax.f32 %v510, 0.0
    %v691 = vmax.f32 %v621, 0.0
    %v692 = vmax.f32 %v623, 0.0
    %v693 = vmax.f32 %v512, 0.0
    %v694 = vmax.f32 %v514, 0.0
    %v695 = vmax.f32 %v625, 0.0
    %v696 = vmax.f32 %v627, 0.0
    %v697 = vmax.f32 %v518, 0.0
    %v698 = vmax.f32 %v520, 0.0
    %v699 = vmax.f32 %v631, 0.0
    %v700 = vmax.f32 %v633, 0.0
    %v701 = vmax.f32 %v522, 0.0
    %v702 = vmax.f32 %v524, 0.0
    %v703 = vmax.f32 %v635, 0.0
    %v704 = vmax.f32 %v637, 0.0
    %v705 = vmax.f32 %v528, 0.0
    %v706 = vmax.f32 %v530, 0.0
    %v707 = vmax.f32 %v641, 0.0
    %v708 = vmax.f32 %v643, 0.0
    %v709 = vmax.f32 %v532, 0.0
    %v710 = vmax.f32 %v534, 0.0
    %v711 = vmax.f32 %v645, 0.0
    %v712 = vmax.f32 %v647, 0.0
    %v713 = vpack.c.bf16 %v653, %v649
    %v714 = vpack.c.bf16 %v654, %v650
    %v715 = vpack.c.bf16 %v655, %v651
    %v716 = vpack.c.bf16 %v656, %v652
    %v717 = vpack.c.bf16 %v661, %v657
    %v718 = vpack.c.bf16 %v662, %v658
    %v719 = vpack.c.bf16 %v663, %v659
    %v720 = vpack.c.bf16 %v664, %v660
    %v721 = vpack.c.bf16 %v669, %v665
    %v722 = vpack.c.bf16 %v670, %v666
    %v723 = vpack.c.bf16 %v671, %v667
    %v724 = vpack.c.bf16 %v672, %v668
    %v725 = vpack.c.bf16 %v677, %v673
    %v726 = vpack.c.bf16 %v678, %v674
    %v727 = vpack.c.bf16 %v679, %v675
    %v728 = vpack.c.bf16 %v680, %v676
    %v729 = vpack.c.bf16 %v685, %v681
    %v730 = vpack.c.bf16 %v686, %v682
    %v731 = vpack.c.bf16 %v687, %v683
    %v732 = vpack.c.bf16 %v688, %v684
    %v733 = vpack.c.bf16 %v693, %v689
    %v734 = vpack.c.bf16 %v694, %v690
    %v735 = vpack.c.bf16 %v695, %v691
    %v736 = vpack.c.bf16 %v696, %v692
    %v737 = vpack.c.bf16 %v701, %v697
    %v738 = vpack.c.bf16 %v702, %v698
    %v739 = vpack.c.bf16 %v703, %v699
    %v740 = vpack.c.bf16 %v704, %v700
    %v741 = vpack.c.bf16 %v709, %v705
    %v742 = vpack.c.bf16 %v710, %v706
    %v743 = vpack.c.bf16 %v711, %v707
    %v744 = vpack.c.bf16 %v712, %v708
    %v745 = vld [vmem:[%s4] sm:$0xf]
    %v746 = vld [vmem:[%s4 + $0x4] sm:$0xf]
    %v747 = vld [vmem:[%s4 + $0x8] sm:$0xf]
    %v748 = vld [vmem:[%s4 + $0xc] sm:$0xf]
    %v749 = vld [vmem:[%s4 + $0x10] sm:$0xf]
    %v750 = vld [vmem:[%s4 + $0x14] sm:$0xf]
    %v751 = vld [vmem:[%s4 + $0x18] sm:$0xf]
    %v752 = vld [vmem:[%s4 + $0x1c] sm:$0xf]
    %v753 = vld [vmem:[%s4 + $0x20] sm:$0xf]
    %v763 = vunpack.c.l.b16 %v745
    %v764 = vunpack.c.l.b16 %v746
    %v765 = vunpack.c.l.b16 %v747
    %v766 = vunpack.c.l.b16 %v748
    %v767 = vunpack.c.l.b16 %v749
    %v768 = vunpack.c.l.b16 %v750
    %v769 = vunpack.c.l.b16 %v751
    %v770 = vunpack.c.l.b16 %v752
    %v771 = vunpack.c.l.b16 %v753
    %v772 = vpack.c.b16 %v764, %v763
    %v773 = vpack.c.b16 %v766, %v765
    %v774 = vpack.c.b16 %v768, %v767
    %v775 = vpack.c.b16 %v770, %v769
    %v776 = vpack.c.b16 %v771, %v771
    %782 = vmatprep.subr.bf16.mxu0 %v742
    %783 = vmatpush1.bf16.msra.mxu0 %v741
    %784 = vmatprep.subr.bf16.mxu0 %v738
    %785 = vmatpush1.bf16.msra.mxu0 %v737
    %786 = vmatprep.subr.bf16.mxu0 %v734
    %787 = vmatpush1.bf16.msra.mxu0 %v733
    %788 = vmatprep.subr.bf16.mxu0 %v730
    %789 = vmatpush1.bf16.msra.mxu0 %v729
    %790 = vmatprep.subr.bf16.mxu0 %v726
    %791 = vmatpush1.bf16.msra.mxu0 %v725
    %792 = vmatprep.subr.bf16.mxu0 %v722
    %793 = vmatpush1.bf16.msra.mxu0 %v721
    %794 = vmatprep.subr.bf16.mxu0 %v718
    %795 = vmatpush1.bf16.msra.mxu0 %v717
    %796 = vmatprep.subr.bf16.mxu0 %v714
    %797 = vmatpush1.bf16.msra.mxu0 %v713
    %798 = vmatprep.subr.bf16.mxu0 0
    %799 = vmatpush2.bf16.msra.mxu0 0
    %800 = vmatprep.subr.bf16.mxu0 0
    %801 = vmatpush2.bf16.msra.mxu0 0
    %802 = vmatprep.subr.bf16.mxu0 0
    %803 = vmatpush2.bf16.msra.mxu0 0
    %804 = vmatprep.subr.bf16.mxu0 0
    %805 = vmatpush2.bf16.msra.mxu0 0
    %806 = vmatprep.subr.bf16.mxu0 0
    %807 = vmatpush2.bf16.msra.mxu0 0
    %808 = vmatprep.subr.bf16.mxu0 0
    %809 = vmatpush2.bf16.msra.mxu0 0
    %810 = vmatprep.subr.bf16.mxu0 0
    %811 = vmatpush2.bf16.msra.mxu0 0
    %812 = vmatprep.subr.bf16.mxu0 0
    %813 = vmatpush2.bf16.msra.mxu0 0
    %814 = vmatprep.mubr.bf16.mxu0 0
    %815 = vmatmul.mubr.bf16.gmra.mxu0 %v772
    %v816 = vpop.f32.mrf.mxu0
    %v817 = vadd.f32 0.0, %v816
    %v818 = vpop.f32.mrf.mxu0
    %v819 = vadd.f32 0.0, %v818
    %v820 = vpop.f32.mrf.mxu0
    %v821 = vadd.f32 0.0, %v820
    %v822 = vpop.f32.mrf.mxu0
    %v823 = vadd.f32 0.0, %v822
    %824 = vmatprep.mubr.bf16.mxu0 0
    %825 = vmatmul.mubr.bf16.gmra.mxu0 %v773
    %v826 = vpop.f32.mrf.mxu0
    %v827 = vadd.f32 0.0, %v826
    %v828 = vpop.f32.mrf.mxu0
    %v829 = vadd.f32 0.0, %v828
    %v830 = vpop.f32.mrf.mxu0
    %v831 = vadd.f32 0.0, %v830
    %v832 = vpop.f32.mrf.mxu0
    %v833 = vadd.f32 0.0, %v832
    %834 = vmatprep.mubr.bf16.mxu0 0
    %835 = vmatmul.mubr.bf16.gmra.mxu0 %v774
    %v836 = vpop.f32.mrf.mxu0
    %v837 = vadd.f32 0.0, %v836
    %v838 = vpop.f32.mrf.mxu0
    %v839 = vadd.f32 0.0, %v838
    %v840 = vpop.f32.mrf.mxu0
    %v841 = vadd.f32 0.0, %v840
    %v842 = vpop.f32.mrf.mxu0
    %v843 = vadd.f32 0.0, %v842
    %844 = vmatprep.mubr.bf16.mxu0 0
    %845 = vmatmul.mubr.bf16.gmra.mxu0 %v775
    %v846 = vpop.f32.mrf.mxu0
    %v847 = vadd.f32 0.0, %v846
    %v848 = vpop.f32.mrf.mxu0
    %v849 = vadd.f32 0.0, %v848
    %v850 = vpop.f32.mrf.mxu0
    %v851 = vadd.f32 0.0, %v850
    %v852 = vpop.f32.mrf.mxu0
    %v853 = vadd.f32 0.0, %v852
    %854 = vmatprep.mubr.bf16.mxu0 0
    %855 = vmatmul.mubr.bf16.gmra.mxu0 %v776
    %v856 = vpop.f32.mrf.mxu0
    %v857 = vadd.f32 0.0, %v856
    %v858 = vpop.f32.mrf.mxu0
    %v859 = vadd.f32 0.0, %v858
    %v860 = vpop.f32.mrf.mxu0
    %v861 = vpop.f32.mrf.mxu0
    %862 = vdwg.mxu0
    %863 = vmatprep.subr.bf16.mxu0 %v744
    %864 = vmatpush1.bf16.msra.mxu0 %v743
    %865 = vmatprep.subr.bf16.mxu0 %v740
    %866 = vmatpush1.bf16.msra.mxu0 %v739
    %867 = vmatprep.subr.bf16.mxu0 %v736
    %868 = vmatpush1.bf16.msra.mxu0 %v735
    %869 = vmatprep.subr.bf16.mxu0 %v732
    %870 = vmatpush1.bf16.msra.mxu0 %v731
    %871 = vmatprep.subr.bf16.mxu0 %v728
    %872 = vmatpush1.bf16.msra.mxu0 %v727
    %873 = vmatprep.subr.bf16.mxu0 %v724
    %874 = vmatpush1.bf16.msra.mxu0 %v723
    %875 = vmatprep.subr.bf16.mxu0 %v720
    %876 = vmatpush1.bf16.msra.mxu0 %v719
    %877 = vmatprep.subr.bf16.mxu0 %v716
    %878 = vmatpush1.bf16.msra.mxu0 %v715
    %879 = vmatprep.subr.bf16.mxu0 0
    %880 = vmatpush2.bf16.msra.mxu0 0
    %881 = vmatprep.subr.bf16.mxu0 0
    %882 = vmatpush2.bf16.msra.mxu0 0
    %883 = vmatprep.subr.bf16.mxu0 0
    %884 = vmatpush2.bf16.msra.mxu0 0
    %885 = vmatprep.subr.bf16.mxu0 0
    %886 = vmatpush2.bf16.msra.mxu0 0
    %887 = vmatprep.subr.bf16.mxu0 0
    %888 = vmatpush2.bf16.msra.mxu0 0
    %889 = vmatprep.subr.bf16.mxu0 0
    %890 = vmatpush2.bf16.msra.mxu0 0
    %891 = vmatprep.subr.bf16.mxu0 0
    %892 = vmatpush2.bf16.msra.mxu0 0
    %893 = vmatprep.subr.bf16.mxu0 0
    %894 = vmatpush2.bf16.msra.mxu0 0
    %895 = vmatprep.mubr.bf16.mxu0 0
    %896 = vmatmul.mubr.bf16.gmra.mxu0 %v772
    %v897 = vpop.f32.mrf.mxu0
    %v898 = vadd.f32 0.0, %v897
    %v899 = vpop.f32.mrf.mxu0
    %v900 = vadd.f32 0.0, %v899
    %v901 = vpop.f32.mrf.mxu0
    %v902 = vadd.f32 0.0, %v901
    %v903 = vpop.f32.mrf.mxu0
    %v904 = vadd.f32 0.0, %v903
    %905 = vmatprep.mubr.bf16.mxu0 0
    %906 = vmatmul.mubr.bf16.gmra.mxu0 %v773
    %v907 = vpop.f32.mrf.mxu0
    %v908 = vadd.f32 0.0, %v907
    %v909 = vpop.f32.mrf.mxu0
    %v910 = vadd.f32 0.0, %v909
    %v911 = vpop.f32.mrf.mxu0
    %v912 = vadd.f32 0.0, %v911
    %v913 = vpop.f32.mrf.mxu0
    %v914 = vadd.f32 0.0, %v913
    %915 = vmatprep.mubr.bf16.mxu0 0
    %916 = vmatmul.mubr.bf16.gmra.mxu0 %v774
    %v917 = vpop.f32.mrf.mxu0
    %v918 = vadd.f32 0.0, %v917
    %v919 = vpop.f32.mrf.mxu0
    %v920 = vadd.f32 0.0, %v919
    %v921 = vpop.f32.mrf.mxu0
    %v922 = vadd.f32 0.0, %v921
    %v923 = vpop.f32.mrf.mxu0
    %v924 = vadd.f32 0.0, %v923
    %925 = vmatprep.mubr.bf16.mxu0 0
    %926 = vmatmul.mubr.bf16.gmra.mxu0 %v775
    %v927 = vpop.f32.mrf.mxu0
    %v928 = vadd.f32 0.0, %v927
    %v929 = vpop.f32.mrf.mxu0
    %v930 = vadd.f32 0.0, %v929
    %v931 = vpop.f32.mrf.mxu0
    %v932 = vadd.f32 0.0, %v931
    %v933 = vpop.f32.mrf.mxu0
    %v934 = vadd.f32 0.0, %v933
    %935 = vmatprep.mubr.bf16.mxu0 0
    %936 = vmatmul.mubr.bf16.gmra.mxu0 %v776
    %v937 = vpop.f32.mrf.mxu0
    %v938 = vadd.f32 0.0, %v937
    %v939 = vpop.f32.mrf.mxu0
    %v940 = vadd.f32 0.0, %v939
    %v941 = vpop.f32.mrf.mxu0
    %v942 = vpop.f32.mrf.mxu0
    %943 = vdwg.mxu0
    %944 = vrot.lane.b32.xlu0 %v817, 17
    %v945 = vpop.permute.xlu0 %944
    %946 = vrot.lane.b32.xlu0 %v819, 17
    %v947 = vpop.permute.xlu0 %946
    %948 = vrot.lane.b32.xlu0 %v898, 17
    %v949 = vpop.permute.xlu0 %948
    %950 = vrot.lane.b32.xlu0 %v900, 17
    %v951 = vpop.permute.xlu0 %950
    %v952 = vsel %vm85, %v949, %v951
    %v953 = vsel %vm85, %v947, %v949
    %v954 = vsel %vm85, %v945, %v947
    %v955 = vsel %vm85, %v951, %v945
    %v956 = vmul.f32 %v955, %v43
    %v957 = vmul.f32 %v954, %v44
    %v958 = vmul.f32 %v953, %v45
    %v959 = vmul.f32 %v952, %v46
    %960 = vrot.lane.b32.xlu0 %v821, 16
    %v961 = vpop.permute.xlu0 %960
    %962 = vrot.lane.b32.xlu0 %v823, 16
    %v963 = vpop.permute.xlu0 %962
    %964 = vrot.lane.b32.xlu0 %v902, 16
    %v965 = vpop.permute.xlu0 %964
    %966 = vrot.lane.b32.xlu0 %v904, 16
    %v967 = vpop.permute.xlu0 %966
    %v968 = vsel %vm102, %v965, %v967
    %v969 = vsel %vm102, %v963, %v965
    %v970 = vsel %vm102, %v961, %v963
    %v971 = vsel %vm102, %v967, %v961
    %v972 = vmul.f32 %v971, %v47
    %v973 = vmul.f32 %v970, %v48
    %v974 = vmul.f32 %v969, %v49
    %v975 = vmul.f32 %v968, %v50
    %v976 = vadd.f32 %v956, %v972
    %v977 = vadd.f32 %v957, %v973
    %v978 = vadd.f32 %v958, %v974
    %v979 = vadd.f32 %v959, %v975
    %980 = vrot.lane.b32.xlu0 %v827, 15
    %v981 = vpop.permute.xlu0 %980
    %982 = vrot.lane.b32.xlu0 %v829, 15
    %v983 = vpop.permute.xlu0 %982
    %984 = vrot.lane.b32.xlu0 %v908, 15
    %v985 = vpop.permute.xlu0 %984
    %986 = vrot.lane.b32.xlu0 %v910, 15
    %v987 = vpop.permute.xlu0 %986
    %v988 = vsel %vm119, %v985, %v987
    %v989 = vsel %vm119, %v983, %v985
    %v990 = vsel %vm119, %v981, %v983
    %v991 = vsel %vm119, %v987, %v981
    %v992 = vmul.f32 %v991, %v51
    %v993 = vmul.f32 %v990, %v52
    %v994 = vmul.f32 %v989, %v53
    %v995 = vmul.f32 %v988, %v54
    %v996 = vadd.f32 %v976, %v992
    %v997 = vadd.f32 %v977, %v993
    %v998 = vadd.f32 %v978, %v994
    %v999 = vadd.f32 %v979, %v995
    %1000 = vrot.lane.b32.xlu0 %v831, 1
    %v1001 = vpop.permute.xlu0 %1000
    %1002 = vrot.lane.b32.xlu0 %v833, 1
    %v1003 = vpop.permute.xlu0 %1002
    %1004 = vrot.lane.b32.xlu0 %v912, 1
    %v1005 = vpop.permute.xlu0 %1004
    %1006 = vrot.lane.b32.xlu0 %v914, 1
    %v1007 = vpop.permute.xlu0 %1006
    %v1008 = vsel %vm136, %v1005, %v1007
    %v1009 = vsel %vm136, %v1003, %v1005
    %v1010 = vsel %vm136, %v1001, %v1003
    %v1011 = vsel %vm136, %v1007, %v1001
    %v1012 = vmul.f32 %v1011, %v55
    %v1013 = vmul.f32 %v1010, %v56
    %v1014 = vmul.f32 %v1009, %v57
    %v1015 = vmul.f32 %v1008, %v58
    %v1016 = vadd.f32 %v996, %v1012
    %v1017 = vadd.f32 %v997, %v1013
    %v1018 = vadd.f32 %v998, %v1014
    %v1019 = vadd.f32 %v999, %v1015
    %v1020 = vadd.f32 %v1016, %v837
    %v1021 = vadd.f32 %v1017, %v839
    %v1022 = vadd.f32 %v1018, %v918
    %v1023 = vadd.f32 %v1019, %v920
    %1024 = vrot.lane.b32.xlu0 %v841, 127
    %v1025 = vpop.permute.xlu0 %1024
    %1026 = vrot.lane.b32.xlu0 %v843, 127
    %v1027 = vpop.permute.xlu0 %1026
    %1028 = vrot.lane.b32.xlu0 %v922, 127
    %v1029 = vpop.permute.xlu0 %1028
    %1030 = vrot.lane.b32.xlu0 %v924, 127
    %v1031 = vpop.permute.xlu0 %1030
    %v1032 = vsel %vm153, %v1029, %v1031
    %v1033 = vsel %vm153, %v1027, %v1029
    %v1034 = vsel %vm153, %v1025, %v1027
    %v1035 = vsel %vm153, %v1031, %v1025
    %v1036 = vmul.f32 %v1034, %v59
    %v1037 = vmul.f32 %v1033, %v60
    %v1038 = vmul.f32 %v1032, %v61
    %v1039 = vmul.f32 %v1035, %v62
    %v1040 = vadd.f32 %v1020, %v1036
    %v1041 = vadd.f32 %v1021, %v1037
    %v1042 = vadd.f32 %v1022, %v1038
    %v1043 = vadd.f32 %v1023, %v1039
    %1044 = vrot.lane.b32.xlu0 %v847, 113
    %v1045 = vpop.permute.xlu0 %1044
    %1046 = vrot.lane.b32.xlu0 %v849, 113
    %v1047 = vpop.permute.xlu0 %1046
    %1048 = vrot.lane.b32.xlu0 %v928, 113
    %v1049 = vpop.permute.xlu0 %1048
    %1050 = vrot.lane.b32.xlu0 %v930, 113
    %v1051 = vpop.permute.xlu0 %1050
    %v1052 = vsel %vm170, %v1049, %v1051
    %v1053 = vsel %vm170, %v1047, %v1049
    %v1054 = vsel %vm170, %v1045, %v1047
    %v1055 = vsel %vm170, %v1051, %v1045
    %v1056 = vmul.f32 %v1054, %v63
    %v1057 = vmul.f32 %v1053, %v64
    %v1058 = vmul.f32 %v1052, %v65
    %v1059 = vmul.f32 %v1055, %v66
    %v1060 = vadd.f32 %v1040, %v1056
    %v1061 = vadd.f32 %v1041, %v1057
    %v1062 = vadd.f32 %v1042, %v1058
    %v1063 = vadd.f32 %v1043, %v1059
    %1064 = vrot.lane.b32.xlu0 %v851, 112
    %v1065 = vpop.permute.xlu0 %1064
    %1066 = vrot.lane.b32.xlu0 %v853, 112
    %v1067 = vpop.permute.xlu0 %1066
    %1068 = vrot.lane.b32.xlu0 %v932, 112
    %v1069 = vpop.permute.xlu0 %1068
    %1070 = vrot.lane.b32.xlu0 %v934, 112
    %v1071 = vpop.permute.xlu0 %1070
    %v1072 = vsel %vm187, %v1069, %v1071
    %v1073 = vsel %vm187, %v1067, %v1069
    %v1074 = vsel %vm187, %v1065, %v1067
    %v1075 = vsel %vm187, %v1071, %v1065
    %v1076 = vmul.f32 %v1074, %v67
    %v1077 = vmul.f32 %v1073, %v68
    %v1078 = vmul.f32 %v1072, %v69
    %v1079 = vmul.f32 %v1075, %v70
    %v1080 = vadd.f32 %v1060, %v1076
    %v1081 = vadd.f32 %v1061, %v1077
    %v1082 = vadd.f32 %v1062, %v1078
    %v1083 = vadd.f32 %v1063, %v1079
    %1084 = vrot.lane.b32.xlu0 %v857, 111
    %v1085 = vpop.permute.xlu0 %1084
    %1086 = vrot.lane.b32.xlu0 %v859, 111
    %v1087 = vpop.permute.xlu0 %1086
    %1088 = vrot.lane.b32.xlu0 %v938, 111
    %v1089 = vpop.permute.xlu0 %1088
    %1090 = vrot.lane.b32.xlu0 %v940, 111
    %v1091 = vpop.permute.xlu0 %1090
    %v1092 = vsel %vm204, %v1089, %v1091
    %v1093 = vsel %vm204, %v1087, %v1089
    %v1094 = vsel %vm204, %v1085, %v1087
    %v1095 = vsel %vm204, %v1091, %v1085
    %v1096 = vmul.f32 %v1094, %v71
    %v1097 = vmul.f32 %v1093, %v72
    %v1098 = vmul.f32 %v1092, %v73
    %v1099 = vmul.f32 %v1095, %v74
    %v1100 = vadd.f32 %v1080, %v1096
    %v1101 = vadd.f32 %v1081, %v1097
    %v1102 = vadd.f32 %v1082, %v1098
    %v1103 = vadd.f32 %v1083, %v1099
    %v1104 = vld [vmem:[%s5] sm:$0xff]
    %1106 = vset.pattern.permute.xlu0 0
    %1107 = vperm.xlu0 %1106, %v1104
    %v1108 = vpop.permute.xlu0 %1107
    %v1110 = vadd.f32 %v1100, %v1108
    %v1111 = vadd.f32 %v1101, %v1108
    %v1112 = vadd.f32 %v1102, %v1108
    %v1113 = vadd.f32 %v1103, %v1108
    %1114 = vst [vmem:[#allocation5] sm:$0xff] %v1110
    %1115 = vst [vmem:[#allocation5 + $0x8] sm:$0xff] %v1111
    %1116 = vst [vmem:[#allocation5 + $0x10] sm:$0xff] %v1112
    %1117 = vst [vmem:[#allocation5 + $0x18] sm:$0xff] %v1113
    // Predicated region
    $region30: #{tpu_custom_call.1} parent=1 // pred_check
      _
    $region31: #{tpu_custom_call.1} parent=1 // pred_check_branch
      %1119 = sbr.rel (0) target = $region33
    $region32: #{tpu_custom_call.1} parent=1 // pred_region
      %s1121 = ssub.s32 512, 512
      %1122 = vsyncadd [#allocation4], %s1121
      %s1124 = sshll.u32 [#allocation5], 4
      %s1125 = int_to_ptr.vmem [resolvable:$true] %s1124
      %1127 = dma.vmem_to_hbm [thread:$0]  %s1125, 512, %s6, [#allocation4]
    $region33: #{tpu_custom_call.1} parent=1 // pred_fallthru
      _
    // Predicated region
    $region34: #{tpu_custom_call.1} parent=1 // pred_check
      _
    $region35: #{tpu_custom_call.1} parent=1 // pred_check_branch
      %1129 = sbr.rel (0) target = $region37
    $region36: #{tpu_custom_call.1} parent=1 // pred_region
      %1130 = dma.done [#allocation4], 512
    $region37: #{tpu_custom_call.1} parent=1 // pred_fallthru
      _
    %1131 = vsyncpa [#allocation3], 1
    %1132 = vsyncpa [#allocation4], 1

</llo_original>
